<compile_context>
chip_gen: v7x
topology: tpu7x:2x2x1
jax: 0.10.0
libtpu: 0.0.40
codegen_flags: <defaults>
</compile_context>

<pallas_src>
import jax
import jax.numpy as jnp
from jax.experimental import pallas as pl

DROP_P = 0.2
SCALE = 30.0
# keep iff u32_bits >= DROP_P * 2^32  ->  P(keep) ~= 1 - DROP_P
_DROP_THRESH = int(DROP_P * (1 << 32))  # 858993459


def _attn_kernel(q_ref, k_ref, v_ref, bits_ref, o_ref):
    # q_ref/k_ref/v_ref: (BH, S, D) in VMEM; bits_ref: (BH, S, S) uint32; o_ref: (BH, S, D)
    q = q_ref[...]
    k = k_ref[...]
    v = v_ref[...]

    # scaled scores; contraction on trailing dim -> no explicit transpose of k
    qk = jnp.einsum("bqd,bkd->bqk", q, k, preferred_element_type=jnp.float32) * SCALE

    # numerically stable softmax over last dim
    m = jnp.max(qk, axis=-1, keepdims=True)
    e = jnp.exp(qk - m)
    denom = jnp.sum(e, axis=-1, keepdims=True)
    # fold the inverted-dropout rescale 1/(1-p) into the normalization factor
    inv = (1.0 / (1.0 - DROP_P)) / denom

    # dropout: single integer compare on raw uniform bits (no float convert chain)
    keep = bits_ref[...] >= jnp.uint32(_DROP_THRESH)
    p_drop = jnp.where(keep, e * inv, 0.0)

    # attention output
    o_ref[...] = jnp.einsum(
        "bqk,bkd->bqd", p_drop, v, preferred_element_type=jnp.float32
    )


def sdpa_dropout(query, key, v, *, rng_key):
    """query, key, v: (B, H, S, D) float32. Returns (B, H, S, D) float32."""
    B, H, S, D = query.shape
    BH = B * H
    qf = query.reshape(BH, S, D).astype(jnp.float32)
    kf = key.reshape(BH, S, D).astype(jnp.float32)
    vf = v.reshape(BH, S, D).astype(jnp.float32)

    # Dropout randomness: drawn once here (portable across TPU + interpret mode).
    bits = jax.random.bits(rng_key, (BH, S, S), dtype=jnp.uint32)

    out = pl.pallas_call(
        _attn_kernel,
        out_shape=jax.ShapeDtypeStruct((BH, S, D), jnp.float32),
    )(qf, kf, vf, bits)

    return out.reshape(B, H, S, D)


class Model:
    """JAX/Pallas port of the PyTorch Model (forward pass, training-mode dropout)."""

    def __init__(self, key_q, key_k):
        # torch.randn(2, 3, 5, 5) parameters, initialized deterministically here.
        self.query = jax.random.normal(key_q, (2, 3, 5, 5), dtype=jnp.float32)
        self.key = jax.random.normal(key_k, (2, 3, 5, 5), dtype=jnp.float32)

    def forward(self, v, rng_key):
        return sdpa_dropout(self.query, self.key, v, rng_key=rng_key)


if __name__ == "__main__":
    root = jax.random.PRNGKey(0)
    k_q, k_k, k_v, k_drop = jax.random.split(root, 4)

    model = Model(k_q, k_k)
    v = jax.random.normal(k_v, (2, 3, 5, 5), dtype=jnp.float32)  # matches torch.randn(2,3,5,5)

    out = model.forward(v, rng_key=k_drop)
    out = jax.block_until_ready(out)

    assert out.shape == (2, 3, 5, 5)
    assert out.dtype == jnp.float32
    assert bool(jnp.all(jnp.isfinite(out)))
    print("KERNEL_OK")
</pallas_src>

<mosaic_0001>
module attributes {stable_mosaic.version = 11 : i64} {
  func.func @_attn_kernel(%arg0: memref<6x5x5xf32, #tpu.memory_space<vmem>>, %arg1: memref<6x5x5xf32, #tpu.memory_space<vmem>>, %arg2: memref<6x5x5xf32, #tpu.memory_space<vmem>>, %arg3: memref<6x5x5xi32, #tpu.memory_space<vmem>>, %arg4: memref<6x5x5xf32, #tpu.memory_space<vmem>>) attributes {dimension_semantics = [], scalar_prefetch = 0 : i64, scratch_operands = 0 : i64, tpu.core_type = #tpu.core_type<tc>} {
    %c0 = arith.constant 0 : index
    %c0_0 = arith.constant 0 : index
    %c0_1 = arith.constant 0 : index
    %0 = vector.load %arg0[%c0, %c0_0, %c0_1] : memref<6x5x5xf32, #tpu.memory_space<vmem>>, vector<6x5x5xf32>
    %c0_2 = arith.constant 0 : index
    %c0_3 = arith.constant 0 : index
    %c0_4 = arith.constant 0 : index
    %1 = vector.load %arg1[%c0_2, %c0_3, %c0_4] : memref<6x5x5xf32, #tpu.memory_space<vmem>>, vector<6x5x5xf32>
    %c0_5 = arith.constant 0 : index
    %c0_6 = arith.constant 0 : index
    %c0_7 = arith.constant 0 : index
    %2 = vector.load %arg2[%c0_5, %c0_6, %c0_7] : memref<6x5x5xf32, #tpu.memory_space<vmem>>, vector<6x5x5xf32>
    "tpu.trace_start"() <{level = 10 : i32, message = "bqd,bkd->bqk"}> : () -> ()
    %cst = arith.constant dense<0.000000e+00> : vector<6x5x5xf32>
    %3 = tpu.matmul %0, %1, %cst {dimension_numbers = #tpu.dot_dimension_numbers<[2], [2], [1], [1], [0, 0, 0, 1, 1, 1], [0], [0]>} : vector<6x5x5xf32>, vector<6x5x5xf32>, vector<6x5x5xf32> -> vector<6x5x5xf32>
    "tpu.trace_stop"() : () -> ()
    %cst_8 = arith.constant 3.000000e+01 : f32
    %4 = vector.broadcast %cst_8 : f32 to vector<6x5x5xf32>
    %5 = arith.mulf %3, %4 : vector<6x5x5xf32>
    %cst_9 = arith.constant dense<0xFF800000> : vector<6x5xf32>
    %6 = vector.multi_reduction <maximumf>, %5, %cst_9 [2] : vector<6x5x5xf32> to vector<6x5xf32>
    %7 = vector.shape_cast %6 : vector<6x5xf32> to vector<6x5x1xf32>
    %8 = vector.broadcast %7 : vector<6x5x1xf32> to vector<6x5x5xf32>
    %9 = arith.subf %5, %8 : vector<6x5x5xf32>
    %10 = math.exp %9 : vector<6x5x5xf32>
    %cst_10 = arith.constant dense<0.000000e+00> : vector<6x5xf32>
    %11 = vector.multi_reduction <add>, %10, %cst_10 [2] : vector<6x5x5xf32> to vector<6x5xf32>
    %12 = vector.shape_cast %11 : vector<6x5xf32> to vector<6x5x1xf32>
    %cst_11 = arith.constant 1.250000e+00 : f32
    %13 = vector.broadcast %cst_11 : f32 to vector<6x5x1xf32>
    %14 = arith.divf %13, %12 : vector<6x5x1xf32>
    %c0_12 = arith.constant 0 : index
    %c0_13 = arith.constant 0 : index
    %c0_14 = arith.constant 0 : index
    %15 = vector.load %arg3[%c0_12, %c0_13, %c0_14] : memref<6x5x5xi32, #tpu.memory_space<vmem>>, vector<6x5x5xi32>
    %c858993459_i32 = arith.constant 858993459 : i32
    %16 = vector.broadcast %c858993459_i32 : i32 to vector<6x5x5xi32>
    %17 = arith.cmpi uge, %15, %16 : vector<6x5x5xi32>
    %18 = vector.broadcast %14 : vector<6x5x1xf32> to vector<6x5x5xf32>
    %19 = arith.mulf %10, %18 : vector<6x5x5xf32>
    %cst_15 = arith.constant 0.000000e+00 : f32
    %20 = vector.broadcast %cst_15 : f32 to vector<6x5x5xf32>
    %21 = arith.select %17, %19, %20 : vector<6x5x5xi1>, vector<6x5x5xf32>
    "tpu.trace_start"() <{level = 10 : i32, message = "bqk,bkd->bqd"}> : () -> ()
    %cst_16 = arith.constant dense<0.000000e+00> : vector<6x5x5xf32>
    %22 = tpu.matmul %21, %2, %cst_16 {dimension_numbers = #tpu.dot_dimension_numbers<[2], [1], [1], [2], [0, 0, 0, 1, 1, 2], [0], [0]>} : vector<6x5x5xf32>, vector<6x5x5xf32>, vector<6x5x5xf32> -> vector<6x5x5xf32>
    "tpu.trace_stop"() : () -> ()
    %c0_17 = arith.constant 0 : index
    %c0_18 = arith.constant 0 : index
    %c0_19 = arith.constant 0 : index
    %23 = vector.load %arg4[%c0_17, %c0_18, %c0_19] : memref<6x5x5xf32, #tpu.memory_space<vmem>>, vector<6x5x5xf32>
    tpu.vector_store %arg4[%c0_17, %c0_18, %c0_19], %22 {strides = array<i32>} : memref<6x5x5xf32, #tpu.memory_space<vmem>>, vector<6x5x5xf32>,
    return
  }
}

</mosaic_0001>

<llo_original>
// kernel: tpu_custom_call.1
$region0: #{tpu_custom_call.1}
  #allocation0 [shape = 'u32[]', space=smem, size = 0x4, offset = 0x4, fixed_abs, tag = 'smem constant byte address 0x4 - core index']
  #allocation1 [shape = 'u32[144,128]{1,0:T(1,128)}', space=vmem, size = 0x12000, scoped, tag = 'internal scratch']
  %s0 = inlined_call_operand.vmem [shape: f32[6,5,5], index: 0, kind: input, shape index: {}]
  %s1 = inlined_call_operand.vmem [shape: f32[6,5,5], index: 1, kind: input, shape index: {}]
  %s2 = inlined_call_operand.vmem [shape: f32[6,5,5], index: 2, kind: input, shape index: {}]
  %s3 = inlined_call_operand.vmem [shape: u32[6,5,5], index: 3, kind: input, shape index: {}]
  %s4 = inlined_call_operand.vmem [shape: f32[6,5,5], index: 4, kind: output, shape index: {}]
  %s5 = sld [smem:[#allocation0]]
  $region26: #{tpu_custom_call.1} parent=0
    _
  %s7 = ssub.s32 1, %s5
  %s8 = scalar_select 0, %s7, %s5
  // Predicated region
  $region2: #{tpu_custom_call.1} parent=0 // pred_check
    _
  $region3: #{tpu_custom_call.1} parent=0 // pred_check_branch
    %10 = sbr.rel (0) target = $region5
  $region4: #{tpu_custom_call.1} parent=0 // pred_region
    _
  $region5: #{tpu_custom_call.1} parent=0 // pred_fallthru
    _
  // Predicated region
  $region6: #{tpu_custom_call.1} parent=0 // pred_check
    _
  $region7: #{tpu_custom_call.1} parent=0 // pred_check_branch
    %12 = sbr.rel (0) target = $region9
  $region8: #{tpu_custom_call.1} parent=0 // pred_region
    _
  $region9: #{tpu_custom_call.1} parent=0 // pred_fallthru
    _
  // Predicated region
  $region10: #{tpu_custom_call.1} parent=0 // pred_check
    _
  $region11: #{tpu_custom_call.1} parent=0 // pred_check_branch
    %14 = sbr.rel (0) target = $region13
  $region12: #{tpu_custom_call.1} parent=0 // pred_region
    _
  $region13: #{tpu_custom_call.1} parent=0 // pred_fallthru
    _
  // Predicated region
  $region14: #{tpu_custom_call.1} parent=0 // pred_check
    _
  $region15: #{tpu_custom_call.1} parent=0 // pred_check_branch
    %16 = sbr.rel (0) target = $region17
  $region16: #{tpu_custom_call.1} parent=0 // pred_region
    _
  $region17: #{tpu_custom_call.1} parent=0 // pred_fallthru
    _
  %v17 = vld [vmem:[%s0] sm:$0x1f]
  %v18 = vld [vmem:[%s0 + $0x8] sm:$0x1f]
  %v19 = vld [vmem:[%s0 + $0x10] sm:$0x1f]
  %v20 = vld [vmem:[%s0 + $0x18] sm:$0x1f]
  %v21 = vld [vmem:[%s0 + $0x20] sm:$0x1f]
  %v22 = vld [vmem:[%s0 + $0x28] sm:$0x1f]
  %v23 = vld [vmem:[%s1] sm:$0x1f]
  %v24 = vld [vmem:[%s1 + $0x8] sm:$0x1f]
  %v25 = vld [vmem:[%s1 + $0x10] sm:$0x1f]
  %v26 = vld [vmem:[%s1 + $0x18] sm:$0x1f]
  %v27 = vld [vmem:[%s1 + $0x20] sm:$0x1f]
  %v28 = vld [vmem:[%s1 + $0x28] sm:$0x1f]
  %v29 = vld [vmem:[%s2] sm:$0x1f]
  %v30 = vld [vmem:[%s2 + $0x8] sm:$0x1f]
  %v31 = vld [vmem:[%s2 + $0x10] sm:$0x1f]
  %v32 = vld [vmem:[%s2 + $0x18] sm:$0x1f]
  %v33 = vld [vmem:[%s2 + $0x20] sm:$0x1f]
  %v34 = vld [vmem:[%s2 + $0x28] sm:$0x1f]
  %vm35 = vcmask 39936
  %v37 = vsel %vm35, %v17, 0
  %v40 = vsel %vm35, %v23, 0
  %42 = vmatprep.subr.mxu0 0.0
  %43 = vmatpush1.xpose.msra.mxu0 %v40
  %44 = vmatprep.subr.mxu0 0.0
  %45 = vmatpush1.xpose.msra.mxu0 0.0
  %46 = vmatprep.subr.mxu0 0.0
  %47 = vmatpush1.xpose.msra.mxu0 0.0
  %48 = vmatprep.subr.mxu0 0.0
  %49 = vmatpush1.xpose.msra.mxu0 0.0
  %50 = vmatprep.subr.mxu0 0.0
  %51 = vmatpush1.xpose.msra.mxu0 0.0
  %52 = vmatprep.subr.mxu0 0.0
  %53 = vmatpush1.xpose.msra.mxu0 0.0
  %54 = vmatprep.subr.mxu0 0.0
  %55 = vmatpush1.xpose.msra.mxu0 0.0
  %56 = vmatprep.subr.mxu0 0.0
  %57 = vmatpush1.xpose.msra.mxu0 0.0
  %58 = vmatprep.subr.mxu0 0.0
  %59 = vmatpush1.xpose.msra.mxu0 0.0
  %60 = vmatprep.subr.mxu0 0.0
  %61 = vmatpush1.xpose.msra.mxu0 0.0
  %62 = vmatprep.subr.mxu0 0.0
  %63 = vmatpush1.xpose.msra.mxu0 0.0
  %64 = vmatprep.subr.mxu0 0.0
  %65 = vmatpush1.xpose.msra.mxu0 0.0
  %66 = vmatprep.subr.mxu0 0.0
  %67 = vmatpush1.xpose.msra.mxu0 0.0
  %68 = vmatprep.subr.mxu0 0.0
  %69 = vmatpush1.xpose.msra.mxu0 0.0
  %70 = vmatprep.subr.mxu0 0.0
  %71 = vmatpush1.xpose.msra.mxu0 0.0
  %72 = vmatprep.subr.mxu0 0.0
  %73 = vmatpush1.xpose.msra.mxu0 0.0
  %74 = vmatprep.subr.mxu0 0.0
  %75 = vmatpush1.xpose.msra.mxu0 0.0
  %76 = vmatprep.subr.mxu0 0.0
  %77 = vmatpush1.xpose.msra.mxu0 0.0
  %78 = vmatprep.subr.mxu0 0.0
  %79 = vmatpush1.xpose.msra.mxu0 0.0
  %80 = vmatprep.subr.mxu0 0.0
  %81 = vmatpush1.xpose.msra.mxu0 0.0
  %82 = vmatprep.subr.mxu0 0.0
  %83 = vmatpush1.xpose.msra.mxu0 0.0
  %84 = vmatprep.subr.mxu0 0.0
  %85 = vmatpush1.xpose.msra.mxu0 0.0
  %86 = vmatprep.subr.mxu0 0.0
  %87 = vmatpush1.xpose.msra.mxu0 0.0
  %88 = vmatprep.subr.mxu0 0.0
  %89 = vmatpush1.xpose.msra.mxu0 0.0
  %90 = vmatprep.subr.mxu0 0.0
  %91 = vmatpush1.xpose.msra.mxu0 0.0
  %92 = vmatprep.subr.mxu0 0.0
  %93 = vmatpush1.xpose.msra.mxu0 0.0
  %94 = vmatprep.subr.mxu0 0.0
  %95 = vmatpush1.xpose.msra.mxu0 0.0
  %96 = vmatprep.subr.mxu0 0.0
  %97 = vmatpush1.xpose.msra.mxu0 0.0
  %98 = vmatprep.subr.mxu0 0.0
  %99 = vmatpush1.xpose.msra.mxu0 0.0
  %100 = vmatprep.subr.mxu0 0.0
  %101 = vmatpush1.xpose.msra.mxu0 0.0
  %102 = vmatprep.subr.mxu0 0.0
  %103 = vmatpush1.xpose.msra.mxu0 0.0
  %104 = vmatprep.subr.mxu0 0.0
  %105 = vmatpush1.xpose.msra.mxu0 0.0
  %106 = vmatprep.mubr.f32.mxu0 0.0
  %107 = vmatmul.mubr.f32.gmra.mrb[0].mxu0 %v37
  %v108 = vpop.f32.mrb[0].mxu0
  %v109 = vadd.f32 0.0, %v108
  %v110 = vpop.f32.mrb[0].mxu0
  %111 = vdwg.mxu0
  %v113 = vsel %vm35, %v18, 0
  %v116 = vsel %vm35, %v24, 0
  %118 = vmatprep.subr.mxu0 0.0
  %119 = vmatpush1.xpose.msra.mxu0 %v116
  %120 = vmatprep.subr.mxu0 0.0
  %121 = vmatpush1.xpose.msra.mxu0 0.0
  %122 = vmatprep.subr.mxu0 0.0
  %123 = vmatpush1.xpose.msra.mxu0 0.0
  %124 = vmatprep.subr.mxu0 0.0
  %125 = vmatpush1.xpose.msra.mxu0 0.0
  %126 = vmatprep.subr.mxu0 0.0
  %127 = vmatpush1.xpose.msra.mxu0 0.0
  %128 = vmatprep.subr.mxu0 0.0
  %129 = vmatpush1.xpose.msra.mxu0 0.0
  %130 = vmatprep.subr.mxu0 0.0
  %131 = vmatpush1.xpose.msra.mxu0 0.0
  %132 = vmatprep.subr.mxu0 0.0
  %133 = vmatpush1.xpose.msra.mxu0 0.0
  %134 = vmatprep.subr.mxu0 0.0
  %135 = vmatpush1.xpose.msra.mxu0 0.0
  %136 = vmatprep.subr.mxu0 0.0
  %137 = vmatpush1.xpose.msra.mxu0 0.0
  %138 = vmatprep.subr.mxu0 0.0
  %139 = vmatpush1.xpose.msra.mxu0 0.0
  %140 = vmatprep.subr.mxu0 0.0
  %141 = vmatpush1.xpose.msra.mxu0 0.0
  %142 = vmatprep.subr.mxu0 0.0
  %143 = vmatpush1.xpose.msra.mxu0 0.0
  %144 = vmatprep.subr.mxu0 0.0
  %145 = vmatpush1.xpose.msra.mxu0 0.0
  %146 = vmatprep.subr.mxu0 0.0
  %147 = vmatpush1.xpose.msra.mxu0 0.0
  %148 = vmatprep.subr.mxu0 0.0
  %149 = vmatpush1.xpose.msra.mxu0 0.0
  %150 = vmatprep.subr.mxu0 0.0
  %151 = vmatpush1.xpose.msra.mxu0 0.0
  %152 = vmatprep.subr.mxu0 0.0
  %153 = vmatpush1.xpose.msra.mxu0 0.0
  %154 = vmatprep.subr.mxu0 0.0
  %155 = vmatpush1.xpose.msra.mxu0 0.0
  %156 = vmatprep.subr.mxu0 0.0
  %157 = vmatpush1.xpose.msra.mxu0 0.0
  %158 = vmatprep.subr.mxu0 0.0
  %159 = vmatpush1.xpose.msra.mxu0 0.0
  %160 = vmatprep.subr.mxu0 0.0
  %161 = vmatpush1.xpose.msra.mxu0 0.0
  %162 = vmatprep.subr.mxu0 0.0
  %163 = vmatpush1.xpose.msra.mxu0 0.0
  %164 = vmatprep.subr.mxu0 0.0
  %165 = vmatpush1.xpose.msra.mxu0 0.0
  %166 = vmatprep.subr.mxu0 0.0
  %167 = vmatpush1.xpose.msra.mxu0 0.0
  %168 = vmatprep.subr.mxu0 0.0
  %169 = vmatpush1.xpose.msra.mxu0 0.0
  %170 = vmatprep.subr.mxu0 0.0
  %171 = vmatpush1.xpose.msra.mxu0 0.0
  %172 = vmatprep.subr.mxu0 0.0
  %173 = vmatpush1.xpose.msra.mxu0 0.0
  %174 = vmatprep.subr.mxu0 0.0
  %175 = vmatpush1.xpose.msra.mxu0 0.0
  %176 = vmatprep.subr.mxu0 0.0
  %177 = vmatpush1.xpose.msra.mxu0 0.0
  %178 = vmatprep.subr.mxu0 0.0
  %179 = vmatpush1.xpose.msra.mxu0 0.0
  %180 = vmatprep.subr.mxu0 0.0
  %181 = vmatpush1.xpose.msra.mxu0 0.0
  %182 = vmatprep.mubr.f32.mxu0 0.0
  %183 = vmatmul.mubr.f32.gmra.mrb[0].mxu0 %v113
  %v184 = vpop.f32.mrb[0].mxu0
  %v185 = vadd.f32 0.0, %v184
  %v186 = vpop.f32.mrb[0].mxu0
  %187 = vdwg.mxu0
  %v189 = vsel %vm35, %v19, 0
  %v192 = vsel %vm35, %v25, 0
  %194 = vmatprep.subr.mxu0 0.0
  %195 = vmatpush1.xpose.msra.mxu0 %v192
  %196 = vmatprep.subr.mxu0 0.0
  %197 = vmatpush1.xpose.msra.mxu0 0.0
  %198 = vmatprep.subr.mxu0 0.0
  %199 = vmatpush1.xpose.msra.mxu0 0.0
  %200 = vmatprep.subr.mxu0 0.0
  %201 = vmatpush1.xpose.msra.mxu0 0.0
  %202 = vmatprep.subr.mxu0 0.0
  %203 = vmatpush1.xpose.msra.mxu0 0.0
  %204 = vmatprep.subr.mxu0 0.0
  %205 = vmatpush1.xpose.msra.mxu0 0.0
  %206 = vmatprep.subr.mxu0 0.0
  %207 = vmatpush1.xpose.msra.mxu0 0.0
  %208 = vmatprep.subr.mxu0 0.0
  %209 = vmatpush1.xpose.msra.mxu0 0.0
  %210 = vmatprep.subr.mxu0 0.0
  %211 = vmatpush1.xpose.msra.mxu0 0.0
  %212 = vmatprep.subr.mxu0 0.0
  %213 = vmatpush1.xpose.msra.mxu0 0.0
  %214 = vmatprep.subr.mxu0 0.0
  %215 = vmatpush1.xpose.msra.mxu0 0.0
  %216 = vmatprep.subr.mxu0 0.0
  %217 = vmatpush1.xpose.msra.mxu0 0.0
  %218 = vmatprep.subr.mxu0 0.0
  %219 = vmatpush1.xpose.msra.mxu0 0.0
  %220 = vmatprep.subr.mxu0 0.0
  %221 = vmatpush1.xpose.msra.mxu0 0.0
  %222 = vmatprep.subr.mxu0 0.0
  %223 = vmatpush1.xpose.msra.mxu0 0.0
  %224 = vmatprep.subr.mxu0 0.0
  %225 = vmatpush1.xpose.msra.mxu0 0.0
  %226 = vmatprep.subr.mxu0 0.0
  %227 = vmatpush1.xpose.msra.mxu0 0.0
  %228 = vmatprep.subr.mxu0 0.0
  %229 = vmatpush1.xpose.msra.mxu0 0.0
  %230 = vmatprep.subr.mxu0 0.0
  %231 = vmatpush1.xpose.msra.mxu0 0.0
  %232 = vmatprep.subr.mxu0 0.0
  %233 = vmatpush1.xpose.msra.mxu0 0.0
  %234 = vmatprep.subr.mxu0 0.0
  %235 = vmatpush1.xpose.msra.mxu0 0.0
  %236 = vmatprep.subr.mxu0 0.0
  %237 = vmatpush1.xpose.msra.mxu0 0.0
  %238 = vmatprep.subr.mxu0 0.0
  %239 = vmatpush1.xpose.msra.mxu0 0.0
  %240 = vmatprep.subr.mxu0 0.0
  %241 = vmatpush1.xpose.msra.mxu0 0.0
  %242 = vmatprep.subr.mxu0 0.0
  %243 = vmatpush1.xpose.msra.mxu0 0.0
  %244 = vmatprep.subr.mxu0 0.0
  %245 = vmatpush1.xpose.msra.mxu0 0.0
  %246 = vmatprep.subr.mxu0 0.0
  %247 = vmatpush1.xpose.msra.mxu0 0.0
  %248 = vmatprep.subr.mxu0 0.0
  %249 = vmatpush1.xpose.msra.mxu0 0.0
  %250 = vmatprep.subr.mxu0 0.0
  %251 = vmatpush1.xpose.msra.mxu0 0.0
  %252 = vmatprep.subr.mxu0 0.0
  %253 = vmatpush1.xpose.msra.mxu0 0.0
  %254 = vmatprep.subr.mxu0 0.0
  %255 = vmatpush1.xpose.msra.mxu0 0.0
  %256 = vmatprep.subr.mxu0 0.0
  %257 = vmatpush1.xpose.msra.mxu0 0.0
  %258 = vmatprep.mubr.f32.mxu0 0.0
  %259 = vmatmul.mubr.f32.gmra.mrb[0].mxu0 %v189
  %v260 = vpop.f32.mrb[0].mxu0
  %v261 = vadd.f32 0.0, %v260
  %v262 = vpop.f32.mrb[0].mxu0
  %263 = vdwg.mxu0
  %v265 = vsel %vm35, %v20, 0
  %v268 = vsel %vm35, %v26, 0
  %270 = vmatprep.subr.mxu0 0.0
  %271 = vmatpush1.xpose.msra.mxu0 %v268
  %272 = vmatprep.subr.mxu0 0.0
  %273 = vmatpush1.xpose.msra.mxu0 0.0
  %274 = vmatprep.subr.mxu0 0.0
  %275 = vmatpush1.xpose.msra.mxu0 0.0
  %276 = vmatprep.subr.mxu0 0.0
  %277 = vmatpush1.xpose.msra.mxu0 0.0
  %278 = vmatprep.subr.mxu0 0.0
  %279 = vmatpush1.xpose.msra.mxu0 0.0
  %280 = vmatprep.subr.mxu0 0.0
  %281 = vmatpush1.xpose.msra.mxu0 0.0
  %282 = vmatprep.subr.mxu0 0.0
  %283 = vmatpush1.xpose.msra.mxu0 0.0
  %284 = vmatprep.subr.mxu0 0.0
  %285 = vmatpush1.xpose.msra.mxu0 0.0
  %286 = vmatprep.subr.mxu0 0.0
  %287 = vmatpush1.xpose.msra.mxu0 0.0
  %288 = vmatprep.subr.mxu0 0.0
  %289 = vmatpush1.xpose.msra.mxu0 0.0
  %290 = vmatprep.subr.mxu0 0.0
  %291 = vmatpush1.xpose.msra.mxu0 0.0
  %292 = vmatprep.subr.mxu0 0.0
  %293 = vmatpush1.xpose.msra.mxu0 0.0
  %294 = vmatprep.subr.mxu0 0.0
  %295 = vmatpush1.xpose.msra.mxu0 0.0
  %296 = vmatprep.subr.mxu0 0.0
  %297 = vmatpush1.xpose.msra.mxu0 0.0
  %298 = vmatprep.subr.mxu0 0.0
  %299 = vmatpush1.xpose.msra.mxu0 0.0
  %300 = vmatprep.subr.mxu0 0.0
  %301 = vmatpush1.xpose.msra.mxu0 0.0
  %302 = vmatprep.subr.mxu0 0.0
  %303 = vmatpush1.xpose.msra.mxu0 0.0
  %304 = vmatprep.subr.mxu0 0.0
  %305 = vmatpush1.xpose.msra.mxu0 0.0
  %306 = vmatprep.subr.mxu0 0.0
  %307 = vmatpush1.xpose.msra.mxu0 0.0
  %308 = vmatprep.subr.mxu0 0.0
  %309 = vmatpush1.xpose.msra.mxu0 0.0
  %310 = vmatprep.subr.mxu0 0.0
  %311 = vmatpush1.xpose.msra.mxu0 0.0
  %312 = vmatprep.subr.mxu0 0.0
  %313 = vmatpush1.xpose.msra.mxu0 0.0
  %314 = vmatprep.subr.mxu0 0.0
  %315 = vmatpush1.xpose.msra.mxu0 0.0
  %316 = vmatprep.subr.mxu0 0.0
  %317 = vmatpush1.xpose.msra.mxu0 0.0
  %318 = vmatprep.subr.mxu0 0.0
  %319 = vmatpush1.xpose.msra.mxu0 0.0
  %320 = vmatprep.subr.mxu0 0.0
  %321 = vmatpush1.xpose.msra.mxu0 0.0
  %322 = vmatprep.subr.mxu0 0.0
  %323 = vmatpush1.xpose.msra.mxu0 0.0
  %324 = vmatprep.subr.mxu0 0.0
  %325 = vmatpush1.xpose.msra.mxu0 0.0
  %326 = vmatprep.subr.mxu0 0.0
  %327 = vmatpush1.xpose.msra.mxu0 0.0
  %328 = vmatprep.subr.mxu0 0.0
  %329 = vmatpush1.xpose.msra.mxu0 0.0
  %330 = vmatprep.subr.mxu0 0.0
  %331 = vmatpush1.xpose.msra.mxu0 0.0
  %332 = vmatprep.subr.mxu0 0.0
  %333 = vmatpush1.xpose.msra.mxu0 0.0
  %334 = vmatprep.mubr.f32.mxu0 0.0
  %335 = vmatmul.mubr.f32.gmra.mrb[0].mxu0 %v265
  %v336 = vpop.f32.mrb[0].mxu0
  %v337 = vadd.f32 0.0, %v336
  %v338 = vpop.f32.mrb[0].mxu0
  %339 = vdwg.mxu0
  %v341 = vsel %vm35, %v21, 0
  %v344 = vsel %vm35, %v27, 0
  %346 = vmatprep.subr.mxu0 0.0
  %347 = vmatpush1.xpose.msra.mxu0 %v344
  %348 = vmatprep.subr.mxu0 0.0
  %349 = vmatpush1.xpose.msra.mxu0 0.0
  %350 = vmatprep.subr.mxu0 0.0
  %351 = vmatpush1.xpose.msra.mxu0 0.0
  %352 = vmatprep.subr.mxu0 0.0
  %353 = vmatpush1.xpose.msra.mxu0 0.0
  %354 = vmatprep.subr.mxu0 0.0
  %355 = vmatpush1.xpose.msra.mxu0 0.0
  %356 = vmatprep.subr.mxu0 0.0
  %357 = vmatpush1.xpose.msra.mxu0 0.0
  %358 = vmatprep.subr.mxu0 0.0
  %359 = vmatpush1.xpose.msra.mxu0 0.0
  %360 = vmatprep.subr.mxu0 0.0
  %361 = vmatpush1.xpose.msra.mxu0 0.0
  %362 = vmatprep.subr.mxu0 0.0
  %363 = vmatpush1.xpose.msra.mxu0 0.0
  %364 = vmatprep.subr.mxu0 0.0
  %365 = vmatpush1.xpose.msra.mxu0 0.0
  %366 = vmatprep.subr.mxu0 0.0
  %367 = vmatpush1.xpose.msra.mxu0 0.0
  %368 = vmatprep.subr.mxu0 0.0
  %369 = vmatpush1.xpose.msra.mxu0 0.0
  %370 = vmatprep.subr.mxu0 0.0
  %371 = vmatpush1.xpose.msra.mxu0 0.0
  %372 = vmatprep.subr.mxu0 0.0
  %373 = vmatpush1.xpose.msra.mxu0 0.0
  %374 = vmatprep.subr.mxu0 0.0
  %375 = vmatpush1.xpose.msra.mxu0 0.0
  %376 = vmatprep.subr.mxu0 0.0
  %377 = vmatpush1.xpose.msra.mxu0 0.0
  %378 = vmatprep.subr.mxu0 0.0
  %379 = vmatpush1.xpose.msra.mxu0 0.0
  %380 = vmatprep.subr.mxu0 0.0
  %381 = vmatpush1.xpose.msra.mxu0 0.0
  %382 = vmatprep.subr.mxu0 0.0
  %383 = vmatpush1.xpose.msra.mxu0 0.0
  %384 = vmatprep.subr.mxu0 0.0
  %385 = vmatpush1.xpose.msra.mxu0 0.0
  %386 = vmatprep.subr.mxu0 0.0
  %387 = vmatpush1.xpose.msra.mxu0 0.0
  %388 = vmatprep.subr.mxu0 0.0
  %389 = vmatpush1.xpose.msra.mxu0 0.0
  %390 = vmatprep.subr.mxu0 0.0
  %391 = vmatpush1.xpose.msra.mxu0 0.0
  %392 = vmatprep.subr.mxu0 0.0
  %393 = vmatpush1.xpose.msra.mxu0 0.0
  %394 = vmatprep.subr.mxu0 0.0
  %395 = vmatpush1.xpose.msra.mxu0 0.0
  %396 = vmatprep.subr.mxu0 0.0
  %397 = vmatpush1.xpose.msra.mxu0 0.0
  %398 = vmatprep.subr.mxu0 0.0
  %399 = vmatpush1.xpose.msra.mxu0 0.0
  %400 = vmatprep.subr.mxu0 0.0
  %401 = vmatpush1.xpose.msra.mxu0 0.0
  %402 = vmatprep.subr.mxu0 0.0
  %403 = vmatpush1.xpose.msra.mxu0 0.0
  %404 = vmatprep.subr.mxu0 0.0
  %405 = vmatpush1.xpose.msra.mxu0 0.0
  %406 = vmatprep.subr.mxu0 0.0
  %407 = vmatpush1.xpose.msra.mxu0 0.0
  %408 = vmatprep.subr.mxu0 0.0
  %409 = vmatpush1.xpose.msra.mxu0 0.0
  %410 = vmatprep.mubr.f32.mxu0 0.0
  %411 = vmatmul.mubr.f32.gmra.mrb[0].mxu0 %v341
  %v412 = vpop.f32.mrb[0].mxu0
  %v413 = vadd.f32 0.0, %v412
  %v414 = vpop.f32.mrb[0].mxu0
  %415 = vdwg.mxu0
  %v417 = vsel %vm35, %v22, 0
  %v420 = vsel %vm35, %v28, 0
  %422 = vmatprep.subr.mxu0 0.0
  %423 = vmatpush1.xpose.msra.mxu0 %v420
  %424 = vmatprep.subr.mxu0 0.0
  %425 = vmatpush1.xpose.msra.mxu0 0.0
  %426 = vmatprep.subr.mxu0 0.0
  %427 = vmatpush1.xpose.msra.mxu0 0.0
  %428 = vmatprep.subr.mxu0 0.0
  %429 = vmatpush1.xpose.msra.mxu0 0.0
  %430 = vmatprep.subr.mxu0 0.0
  %431 = vmatpush1.xpose.msra.mxu0 0.0
  %432 = vmatprep.subr.mxu0 0.0
  %433 = vmatpush1.xpose.msra.mxu0 0.0
  %434 = vmatprep.subr.mxu0 0.0
  %435 = vmatpush1.xpose.msra.mxu0 0.0
  %436 = vmatprep.subr.mxu0 0.0
  %437 = vmatpush1.xpose.msra.mxu0 0.0
  %438 = vmatprep.subr.mxu0 0.0
  %439 = vmatpush1.xpose.msra.mxu0 0.0
  %440 = vmatprep.subr.mxu0 0.0
  %441 = vmatpush1.xpose.msra.mxu0 0.0
  %442 = vmatprep.subr.mxu0 0.0
  %443 = vmatpush1.xpose.msra.mxu0 0.0
  %444 = vmatprep.subr.mxu0 0.0
  %445 = vmatpush1.xpose.msra.mxu0 0.0
  %446 = vmatprep.subr.mxu0 0.0
  %447 = vmatpush1.xpose.msra.mxu0 0.0
  %448 = vmatprep.subr.mxu0 0.0
  %449 = vmatpush1.xpose.msra.mxu0 0.0
  %450 = vmatprep.subr.mxu0 0.0
  %451 = vmatpush1.xpose.msra.mxu0 0.0
  %452 = vmatprep.subr.mxu0 0.0
  %453 = vmatpush1.xpose.msra.mxu0 0.0
  %454 = vmatprep.subr.mxu0 0.0
  %455 = vmatpush1.xpose.msra.mxu0 0.0
  %456 = vmatprep.subr.mxu0 0.0
  %457 = vmatpush1.xpose.msra.mxu0 0.0
  %458 = vmatprep.subr.mxu0 0.0
  %459 = vmatpush1.xpose.msra.mxu0 0.0
  %460 = vmatprep.subr.mxu0 0.0
  %461 = vmatpush1.xpose.msra.mxu0 0.0
  %462 = vmatprep.subr.mxu0 0.0
  %463 = vmatpush1.xpose.msra.mxu0 0.0
  %464 = vmatprep.subr.mxu0 0.0
  %465 = vmatpush1.xpose.msra.mxu0 0.0
  %466 = vmatprep.subr.mxu0 0.0
  %467 = vmatpush1.xpose.msra.mxu0 0.0
  %468 = vmatprep.subr.mxu0 0.0
  %469 = vmatpush1.xpose.msra.mxu0 0.0
  %470 = vmatprep.subr.mxu0 0.0
  %471 = vmatpush1.xpose.msra.mxu0 0.0
  %472 = vmatprep.subr.mxu0 0.0
  %473 = vmatpush1.xpose.msra.mxu0 0.0
  %474 = vmatprep.subr.mxu0 0.0
  %475 = vmatpush1.xpose.msra.mxu0 0.0
  %476 = vmatprep.subr.mxu0 0.0
  %477 = vmatpush1.xpose.msra.mxu0 0.0
  %478 = vmatprep.subr.mxu0 0.0
  %479 = vmatpush1.xpose.msra.mxu0 0.0
  %480 = vmatprep.subr.mxu0 0.0
  %481 = vmatpush1.xpose.msra.mxu0 0.0
  %482 = vmatprep.subr.mxu0 0.0
  %483 = vmatpush1.xpose.msra.mxu0 0.0
  %484 = vmatprep.subr.mxu0 0.0
  %485 = vmatpush1.xpose.msra.mxu0 0.0
  %486 = vmatprep.mubr.f32.mxu0 0.0
  %487 = vmatmul.mubr.f32.gmra.mrb[0].mxu0 %v417
  %v488 = vpop.f32.mrb[0].mxu0
  %v489 = vadd.f32 0.0, %v488
  %v490 = vpop.f32.mrb[0].mxu0
  %491 = vdwg.mxu0
  %v492 = vmul.f32 %v109, 30.0
  %v493 = vmul.f32 %v185, 30.0
  %v494 = vmul.f32 %v261, 30.0
  %v495 = vmul.f32 %v337, 30.0
  %v496 = vmul.f32 %v413, 30.0
  %v497 = vmul.f32 %v489, 30.0
  %vm498 = vcmask 36864
  %v499 = vsel %vm498, %v492, -inf
  %500 = vmax.xlane.f32.xlu0 %v499
  %v501 = vpop.xlane.xlu0 %500
  %v502 = vsel %vm498, %v493, -inf
  %503 = vmax.xlane.f32.xlu0 %v502
  %v504 = vpop.xlane.xlu0 %503
  %v505 = vsel %vm498, %v494, -inf
  %506 = vmax.xlane.f32.xlu0 %v505
  %v507 = vpop.xlane.xlu0 %506
  %v508 = vsel %vm498, %v495, -inf
  %509 = vmax.xlane.f32.xlu0 %v508
  %v510 = vpop.xlane.xlu0 %509
  %v511 = vsel %vm498, %v496, -inf
  %512 = vmax.xlane.f32.xlu0 %v511
  %v513 = vpop.xlane.xlu0 %512
  %v514 = vsel %vm498, %v497, -inf
  %515 = vmax.xlane.f32.xlu0 %v514
  %v516 = vpop.xlane.xlu0 %515
  %v517 = vsub.f32 %v492, %v501
  %v518 = vsub.f32 %v493, %v504
  %v519 = vsub.f32 %v494, %v507
  %v520 = vsub.f32 %v495, %v510
  %v521 = vsub.f32 %v496, %v513
  %v522 = vsub.f32 %v497, %v516
  %v523 = vmul.f32 %v517, 1.442695
  %v524 = vpow.pop %v523
  %v525 = vmul.f32 %v518, 1.442695
  %v526 = vpow.pop %v525
  %v527 = vmul.f32 %v519, 1.442695
  %v528 = vpow.pop %v527
  %v529 = vmul.f32 %v520, 1.442695
  %v530 = vpow.pop %v529
  %v531 = vmul.f32 %v521, 1.442695
  %v532 = vpow.pop %v531
  %v533 = vmul.f32 %v522, 1.442695
  %v534 = vpow.pop %v533
  %v535 = vsel %vm498, %v524, 0.0
  %536 = vadd.xlane.f32.xlu0 %v535
  %v537 = vpop.xlane.xlu0 %536
  %v538 = vsel %vm498, %v526, 0.0
  %539 = vadd.xlane.f32.xlu0 %v538
  %v540 = vpop.xlane.xlu0 %539
  %v541 = vsel %vm498, %v528, 0.0
  %542 = vadd.xlane.f32.xlu0 %v541
  %v543 = vpop.xlane.xlu0 %542
  %v544 = vsel %vm498, %v530, 0.0
  %545 = vadd.xlane.f32.xlu0 %v544
  %v546 = vpop.xlane.xlu0 %545
  %v547 = vsel %vm498, %v532, 0.0
  %548 = vadd.xlane.f32.xlu0 %v547
  %v549 = vpop.xlane.xlu0 %548
  %v550 = vsel %vm498, %v534, 0.0
  %551 = vadd.xlane.f32.xlu0 %v550
  %v552 = vpop.xlane.xlu0 %551
  %v553 = vrcp.pop %v537
  %v554 = vmul.f32 1.25, %v553
  %v555 = vrcp.pop %v540
  %v556 = vmul.f32 1.25, %v555
  %v557 = vrcp.pop %v543
  %v558 = vmul.f32 1.25, %v557
  %v559 = vrcp.pop %v546
  %v560 = vmul.f32 1.25, %v559
  %v561 = vrcp.pop %v549
  %v562 = vmul.f32 1.25, %v561
  %v563 = vrcp.pop %v552
  %v564 = vmul.f32 1.25, %v563
  %v565 = vld [vmem:[%s3] sm:$0x1f]
  %v566 = vld [vmem:[%s3 + $0x8] sm:$0x1f]
  %v567 = vld [vmem:[%s3 + $0x10] sm:$0x1f]
  %v568 = vld [vmem:[%s3 + $0x18] sm:$0x1f]
  %v569 = vld [vmem:[%s3 + $0x20] sm:$0x1f]
  %v570 = vld [vmem:[%s3 + $0x28] sm:$0x1f]
  %vm571 = vcmp.ge.u32.totalorder %v565, 858993459
  %vm572 = vcmp.ge.u32.totalorder %v566, 858993459
  %vm573 = vcmp.ge.u32.totalorder %v567, 858993459
  %vm574 = vcmp.ge.u32.totalorder %v568, 858993459
  %vm575 = vcmp.ge.u32.totalorder %v569, 858993459
  %vm576 = vcmp.ge.u32.totalorder %v570, 858993459
  %v577 = vmul.f32 %v524, %v554
  %v578 = vmul.f32 %v526, %v556
  %v579 = vmul.f32 %v528, %v558
  %v580 = vmul.f32 %v530, %v560
  %v581 = vmul.f32 %v532, %v562
  %v582 = vmul.f32 %v534, %v564
  %v583 = vsel %vm571, %v577, 0.0
  %v584 = vsel %vm572, %v578, 0.0
  %v585 = vsel %vm573, %v579, 0.0
  %v586 = vsel %vm574, %v580, 0.0
  %v587 = vsel %vm575, %v581, 0.0
  %v588 = vsel %vm576, %v582, 0.0
  %v590 = vsel %vm35, %v583, 0
  %vm592 = vcmask 1044480
  %v594 = vsel %vm592, %v29, 0
  %596 = vmatprep.subr.mxu0 0.0
  %597 = vmatpush1.msra.mxu0 %v594
  %598 = vmatprep.subr.mxu0 0.0
  %599 = vmatpush1.msra.mxu0 0.0
  %600 = vmatprep.subr.mxu0 0.0
  %601 = vmatpush1.msra.mxu0 0.0
  %602 = vmatprep.subr.mxu0 0.0
  %603 = vmatpush1.msra.mxu0 0.0
  %604 = vmatprep.subr.mxu0 0.0
  %605 = vmatpush1.msra.mxu0 0.0
  %606 = vmatprep.subr.mxu0 0.0
  %607 = vmatpush1.msra.mxu0 0.0
  %608 = vmatprep.subr.mxu0 0.0
  %609 = vmatpush1.msra.mxu0 0.0
  %610 = vmatprep.subr.mxu0 0.0
  %611 = vmatpush1.msra.mxu0 0.0
  %612 = vmatprep.subr.mxu0 0.0
  %613 = vmatpush1.msra.mxu0 0.0
  %614 = vmatprep.subr.mxu0 0.0
  %615 = vmatpush1.msra.mxu0 0.0
  %616 = vmatprep.subr.mxu0 0.0
  %617 = vmatpush1.msra.mxu0 0.0
  %618 = vmatprep.subr.mxu0 0.0
  %619 = vmatpush1.msra.mxu0 0.0
  %620 = vmatprep.subr.mxu0 0.0
  %621 = vmatpush1.msra.mxu0 0.0
  %622 = vmatprep.subr.mxu0 0.0
  %623 = vmatpush1.msra.mxu0 0.0
  %624 = vmatprep.subr.mxu0 0.0
  %625 = vmatpush1.msra.mxu0 0.0
  %626 = vmatprep.subr.mxu0 0.0
  %627 = vmatpush1.msra.mxu0 0.0
  %628 = vmatprep.subr.mxu0 0.0
  %629 = vmatpush1.msra.mxu0 0.0
  %630 = vmatprep.subr.mxu0 0.0
  %631 = vmatpush1.msra.mxu0 0.0
  %632 = vmatprep.subr.mxu0 0.0
  %633 = vmatpush1.msra.mxu0 0.0
  %634 = vmatprep.subr.mxu0 0.0
  %635 = vmatpush1.msra.mxu0 0.0
  %636 = vmatprep.subr.mxu0 0.0
  %637 = vmatpush1.msra.mxu0 0.0
  %638 = vmatprep.subr.mxu0 0.0
  %639 = vmatpush1.msra.mxu0 0.0
  %640 = vmatprep.subr.mxu0 0.0
  %641 = vmatpush1.msra.mxu0 0.0
  %642 = vmatprep.subr.mxu0 0.0
  %643 = vmatpush1.msra.mxu0 0.0
  %644 = vmatprep.subr.mxu0 0.0
  %645 = vmatpush1.msra.mxu0 0.0
  %646 = vmatprep.subr.mxu0 0.0
  %647 = vmatpush1.msra.mxu0 0.0
  %648 = vmatprep.subr.mxu0 0.0
  %649 = vmatpush1.msra.mxu0 0.0
  %650 = vmatprep.subr.mxu0 0.0
  %651 = vmatpush1.msra.mxu0 0.0
  %652 = vmatprep.subr.mxu0 0.0
  %653 = vmatpush1.msra.mxu0 0.0
  %654 = vmatprep.subr.mxu0 0.0
  %655 = vmatpush1.msra.mxu0 0.0
  %656 = vmatprep.subr.mxu0 0.0
  %657 = vmatpush1.msra.mxu0 0.0
  %658 = vmatprep.subr.mxu0 0.0
  %659 = vmatpush1.msra.mxu0 0.0
  %660 = vmatprep.mubr.f32.mxu0 0.0
  %661 = vmatmul.mubr.f32.gmra.mrb[0].mxu0 %v590
  %v662 = vpop.f32.mrb[0].mxu0
  %v663 = vadd.f32 0.0, %v662
  %v664 = vpop.f32.mrb[0].mxu0
  %665 = vdwg.mxu0
  %v667 = vsel %vm35, %v584, 0
  %v670 = vsel %vm592, %v30, 0
  %672 = vmatprep.subr.mxu0 0.0
  %673 = vmatpush1.msra.mxu0 %v670
  %674 = vmatprep.subr.mxu0 0.0
  %675 = vmatpush1.msra.mxu0 0.0
  %676 = vmatprep.subr.mxu0 0.0
  %677 = vmatpush1.msra.mxu0 0.0
  %678 = vmatprep.subr.mxu0 0.0
  %679 = vmatpush1.msra.mxu0 0.0
  %680 = vmatprep.subr.mxu0 0.0
  %681 = vmatpush1.msra.mxu0 0.0
  %682 = vmatprep.subr.mxu0 0.0
  %683 = vmatpush1.msra.mxu0 0.0
  %684 = vmatprep.subr.mxu0 0.0
  %685 = vmatpush1.msra.mxu0 0.0
  %686 = vmatprep.subr.mxu0 0.0
  %687 = vmatpush1.msra.mxu0 0.0
  %688 = vmatprep.subr.mxu0 0.0
  %689 = vmatpush1.msra.mxu0 0.0
  %690 = vmatprep.subr.mxu0 0.0
  %691 = vmatpush1.msra.mxu0 0.0
  %692 = vmatprep.subr.mxu0 0.0
  %693 = vmatpush1.msra.mxu0 0.0
  %694 = vmatprep.subr.mxu0 0.0
  %695 = vmatpush1.msra.mxu0 0.0
  %696 = vmatprep.subr.mxu0 0.0
  %697 = vmatpush1.msra.mxu0 0.0
  %698 = vmatprep.subr.mxu0 0.0
  %699 = vmatpush1.msra.mxu0 0.0
  %700 = vmatprep.subr.mxu0 0.0
  %701 = vmatpush1.msra.mxu0 0.0
  %702 = vmatprep.subr.mxu0 0.0
  %703 = vmatpush1.msra.mxu0 0.0
  %704 = vmatprep.subr.mxu0 0.0
  %705 = vmatpush1.msra.mxu0 0.0
  %706 = vmatprep.subr.mxu0 0.0
  %707 = vmatpush1.msra.mxu0 0.0
  %708 = vmatprep.subr.mxu0 0.0
  %709 = vmatpush1.msra.mxu0 0.0
  %710 = vmatprep.subr.mxu0 0.0
  %711 = vmatpush1.msra.mxu0 0.0
  %712 = vmatprep.subr.mxu0 0.0
  %713 = vmatpush1.msra.mxu0 0.0
  %714 = vmatprep.subr.mxu0 0.0
  %715 = vmatpush1.msra.mxu0 0.0
  %716 = vmatprep.subr.mxu0 0.0
  %717 = vmatpush1.msra.mxu0 0.0
  %718 = vmatprep.subr.mxu0 0.0
  %719 = vmatpush1.msra.mxu0 0.0
  %720 = vmatprep.subr.mxu0 0.0
  %721 = vmatpush1.msra.mxu0 0.0
  %722 = vmatprep.subr.mxu0 0.0
  %723 = vmatpush1.msra.mxu0 0.0
  %724 = vmatprep.subr.mxu0 0.0
  %725 = vmatpush1.msra.mxu0 0.0
  %726 = vmatprep.subr.mxu0 0.0
  %727 = vmatpush1.msra.mxu0 0.0
  %728 = vmatprep.subr.mxu0 0.0
  %729 = vmatpush1.msra.mxu0 0.0
  %730 = vmatprep.subr.mxu0 0.0
  %731 = vmatpush1.msra.mxu0 0.0
  %732 = vmatprep.subr.mxu0 0.0
  %733 = vmatpush1.msra.mxu0 0.0
  %734 = vmatprep.subr.mxu0 0.0
  %735 = vmatpush1.msra.mxu0 0.0
  %736 = vmatprep.mubr.f32.mxu0 0.0
  %737 = vmatmul.mubr.f32.gmra.mrb[0].mxu0 %v667
  %v738 = vpop.f32.mrb[0].mxu0
  %v739 = vadd.f32 0.0, %v738
  %v740 = vpop.f32.mrb[0].mxu0
  %741 = vdwg.mxu0
  %v743 = vsel %vm35, %v585, 0
  %v746 = vsel %vm592, %v31, 0
  %748 = vmatprep.subr.mxu0 0.0
  %749 = vmatpush1.msra.mxu0 %v746
  %750 = vmatprep.subr.mxu0 0.0
  %751 = vmatpush1.msra.mxu0 0.0
  %752 = vmatprep.subr.mxu0 0.0
  %753 = vmatpush1.msra.mxu0 0.0
  %754 = vmatprep.subr.mxu0 0.0
  %755 = vmatpush1.msra.mxu0 0.0
  %756 = vmatprep.subr.mxu0 0.0
  %757 = vmatpush1.msra.mxu0 0.0
  %758 = vmatprep.subr.mxu0 0.0
  %759 = vmatpush1.msra.mxu0 0.0
  %760 = vmatprep.subr.mxu0 0.0
  %761 = vmatpush1.msra.mxu0 0.0
  %762 = vmatprep.subr.mxu0 0.0
  %763 = vmatpush1.msra.mxu0 0.0
  %764 = vmatprep.subr.mxu0 0.0
  %765 = vmatpush1.msra.mxu0 0.0
  %766 = vmatprep.subr.mxu0 0.0
  %767 = vmatpush1.msra.mxu0 0.0
  %768 = vmatprep.subr.mxu0 0.0
  %769 = vmatpush1.msra.mxu0 0.0
  %770 = vmatprep.subr.mxu0 0.0
  %771 = vmatpush1.msra.mxu0 0.0
  %772 = vmatprep.subr.mxu0 0.0
  %773 = vmatpush1.msra.mxu0 0.0
  %774 = vmatprep.subr.mxu0 0.0
  %775 = vmatpush1.msra.mxu0 0.0
  %776 = vmatprep.subr.mxu0 0.0
  %777 = vmatpush1.msra.mxu0 0.0
  %778 = vmatprep.subr.mxu0 0.0
  %779 = vmatpush1.msra.mxu0 0.0
  %780 = vmatprep.subr.mxu0 0.0
  %781 = vmatpush1.msra.mxu0 0.0
  %782 = vmatprep.subr.mxu0 0.0
  %783 = vmatpush1.msra.mxu0 0.0
  %784 = vmatprep.subr.mxu0 0.0
  %785 = vmatpush1.msra.mxu0 0.0
  %786 = vmatprep.subr.mxu0 0.0
  %787 = vmatpush1.msra.mxu0 0.0
  %788 = vmatprep.subr.mxu0 0.0
  %789 = vmatpush1.msra.mxu0 0.0
  %790 = vmatprep.subr.mxu0 0.0
  %791 = vmatpush1.msra.mxu0 0.0
  %792 = vmatprep.subr.mxu0 0.0
  %793 = vmatpush1.msra.mxu0 0.0
  %794 = vmatprep.subr.mxu0 0.0
  %795 = vmatpush1.msra.mxu0 0.0
  %796 = vmatprep.subr.mxu0 0.0
  %797 = vmatpush1.msra.mxu0 0.0
  %798 = vmatprep.subr.mxu0 0.0
  %799 = vmatpush1.msra.mxu0 0.0
  %800 = vmatprep.subr.mxu0 0.0
  %801 = vmatpush1.msra.mxu0 0.0
  %802 = vmatprep.subr.mxu0 0.0
  %803 = vmatpush1.msra.mxu0 0.0
  %804 = vmatprep.subr.mxu0 0.0
  %805 = vmatpush1.msra.mxu0 0.0
  %806 = vmatprep.subr.mxu0 0.0
  %807 = vmatpush1.msra.mxu0 0.0
  %808 = vmatprep.subr.mxu0 0.0
  %809 = vmatpush1.msra.mxu0 0.0
  %810 = vmatprep.subr.mxu0 0.0
  %811 = vmatpush1.msra.mxu0 0.0
  %812 = vmatprep.mubr.f32.mxu0 0.0
  %813 = vmatmul.mubr.f32.gmra.mrb[0].mxu0 %v743
  %v814 = vpop.f32.mrb[0].mxu0
  %v815 = vadd.f32 0.0, %v814
  %v816 = vpop.f32.mrb[0].mxu0
  %817 = vdwg.mxu0
  %v819 = vsel %vm35, %v586, 0
  %v822 = vsel %vm592, %v32, 0
  %824 = vmatprep.subr.mxu0 0.0
  %825 = vmatpush1.msra.mxu0 %v822
  %826 = vmatprep.subr.mxu0 0.0
  %827 = vmatpush1.msra.mxu0 0.0
  %828 = vmatprep.subr.mxu0 0.0
  %829 = vmatpush1.msra.mxu0 0.0
  %830 = vmatprep.subr.mxu0 0.0
  %831 = vmatpush1.msra.mxu0 0.0
  %832 = vmatprep.subr.mxu0 0.0
  %833 = vmatpush1.msra.mxu0 0.0
  %834 = vmatprep.subr.mxu0 0.0
  %835 = vmatpush1.msra.mxu0 0.0
  %836 = vmatprep.subr.mxu0 0.0
  %837 = vmatpush1.msra.mxu0 0.0
  %838 = vmatprep.subr.mxu0 0.0
  %839 = vmatpush1.msra.mxu0 0.0
  %840 = vmatprep.subr.mxu0 0.0
  %841 = vmatpush1.msra.mxu0 0.0
  %842 = vmatprep.subr.mxu0 0.0
  %843 = vmatpush1.msra.mxu0 0.0
  %844 = vmatprep.subr.mxu0 0.0
  %845 = vmatpush1.msra.mxu0 0.0
  %846 = vmatprep.subr.mxu0 0.0
  %847 = vmatpush1.msra.mxu0 0.0
  %848 = vmatprep.subr.mxu0 0.0
  %849 = vmatpush1.msra.mxu0 0.0
  %850 = vmatprep.subr.mxu0 0.0
  %851 = vmatpush1.msra.mxu0 0.0
  %852 = vmatprep.subr.mxu0 0.0
  %853 = vmatpush1.msra.mxu0 0.0
  %854 = vmatprep.subr.mxu0 0.0
  %855 = vmatpush1.msra.mxu0 0.0
  %856 = vmatprep.subr.mxu0 0.0
  %857 = vmatpush1.msra.mxu0 0.0
  %858 = vmatprep.subr.mxu0 0.0
  %859 = vmatpush1.msra.mxu0 0.0
  %860 = vmatprep.subr.mxu0 0.0
  %861 = vmatpush1.msra.mxu0 0.0
  %862 = vmatprep.subr.mxu0 0.0
  %863 = vmatpush1.msra.mxu0 0.0
  %864 = vmatprep.subr.mxu0 0.0
  %865 = vmatpush1.msra.mxu0 0.0
  %866 = vmatprep.subr.mxu0 0.0
  %867 = vmatpush1.msra.mxu0 0.0
  %868 = vmatprep.subr.mxu0 0.0
  %869 = vmatpush1.msra.mxu0 0.0
  %870 = vmatprep.subr.mxu0 0.0
  %871 = vmatpush1.msra.mxu0 0.0
  %872 = vmatprep.subr.mxu0 0.0
  %873 = vmatpush1.msra.mxu0 0.0
  %874 = vmatprep.subr.mxu0 0.0
  %875 = vmatpush1.msra.mxu0 0.0
  %876 = vmatprep.subr.mxu0 0.0
  %877 = vmatpush1.msra.mxu0 0.0
  %878 = vmatprep.subr.mxu0 0.0
  %879 = vmatpush1.msra.mxu0 0.0
  %880 = vmatprep.subr.mxu0 0.0
  %881 = vmatpush1.msra.mxu0 0.0
  %882 = vmatprep.subr.mxu0 0.0
  %883 = vmatpush1.msra.mxu0 0.0
  %884 = vmatprep.subr.mxu0 0.0
  %885 = vmatpush1.msra.mxu0 0.0
  %886 = vmatprep.subr.mxu0 0.0
  %887 = vmatpush1.msra.mxu0 0.0
  %888 = vmatprep.mubr.f32.mxu0 0.0
  %889 = vmatmul.mubr.f32.gmra.mrb[0].mxu0 %v819
  %v890 = vpop.f32.mrb[0].mxu0
  %v891 = vadd.f32 0.0, %v890
  %v892 = vpop.f32.mrb[0].mxu0
  %893 = vdwg.mxu0
  %v895 = vsel %vm35, %v587, 0
  %v898 = vsel %vm592, %v33, 0
  %900 = vmatprep.subr.mxu0 0.0
  %901 = vmatpush1.msra.mxu0 %v898
  %902 = vmatprep.subr.mxu0 0.0
  %903 = vmatpush1.msra.mxu0 0.0
  %904 = vmatprep.subr.mxu0 0.0
  %905 = vmatpush1.msra.mxu0 0.0
  %906 = vmatprep.subr.mxu0 0.0
  %907 = vmatpush1.msra.mxu0 0.0
  %908 = vmatprep.subr.mxu0 0.0
  %909 = vmatpush1.msra.mxu0 0.0
  %910 = vmatprep.subr.mxu0 0.0
  %911 = vmatpush1.msra.mxu0 0.0
  %912 = vmatprep.subr.mxu0 0.0
  %913 = vmatpush1.msra.mxu0 0.0
  %914 = vmatprep.subr.mxu0 0.0
  %915 = vmatpush1.msra.mxu0 0.0
  %916 = vmatprep.subr.mxu0 0.0
  %917 = vmatpush1.msra.mxu0 0.0
  %918 = vmatprep.subr.mxu0 0.0
  %919 = vmatpush1.msra.mxu0 0.0
  %920 = vmatprep.subr.mxu0 0.0
  %921 = vmatpush1.msra.mxu0 0.0
  %922 = vmatprep.subr.mxu0 0.0
  %923 = vmatpush1.msra.mxu0 0.0
  %924 = vmatprep.subr.mxu0 0.0
  %925 = vmatpush1.msra.mxu0 0.0
  %926 = vmatprep.subr.mxu0 0.0
  %927 = vmatpush1.msra.mxu0 0.0
  %928 = vmatprep.subr.mxu0 0.0
  %929 = vmatpush1.msra.mxu0 0.0
  %930 = vmatprep.subr.mxu0 0.0
  %931 = vmatpush1.msra.mxu0 0.0
  %932 = vmatprep.subr.mxu0 0.0
  %933 = vmatpush1.msra.mxu0 0.0
  %934 = vmatprep.subr.mxu0 0.0
  %935 = vmatpush1.msra.mxu0 0.0
  %936 = vmatprep.subr.mxu0 0.0
  %937 = vmatpush1.msra.mxu0 0.0
  %938 = vmatprep.subr.mxu0 0.0
  %939 = vmatpush1.msra.mxu0 0.0
  %940 = vmatprep.subr.mxu0 0.0
  %941 = vmatpush1.msra.mxu0 0.0
  %942 = vmatprep.subr.mxu0 0.0
  %943 = vmatpush1.msra.mxu0 0.0
  %944 = vmatprep.subr.mxu0 0.0
  %945 = vmatpush1.msra.mxu0 0.0
  %946 = vmatprep.subr.mxu0 0.0
  %947 = vmatpush1.msra.mxu0 0.0
  %948 = vmatprep.subr.mxu0 0.0
  %949 = vmatpush1.msra.mxu0 0.0
  %950 = vmatprep.subr.mxu0 0.0
  %951 = vmatpush1.msra.mxu0 0.0
  %952 = vmatprep.subr.mxu0 0.0
  %953 = vmatpush1.msra.mxu0 0.0
  %954 = vmatprep.subr.mxu0 0.0
  %955 = vmatpush1.msra.mxu0 0.0
  %956 = vmatprep.subr.mxu0 0.0
  %957 = vmatpush1.msra.mxu0 0.0
  %958 = vmatprep.subr.mxu0 0.0
  %959 = vmatpush1.msra.mxu0 0.0
  %960 = vmatprep.subr.mxu0 0.0
  %961 = vmatpush1.msra.mxu0 0.0
  %962 = vmatprep.subr.mxu0 0.0
  %963 = vmatpush1.msra.mxu0 0.0
  %964 = vmatprep.mubr.f32.mxu0 0.0
  %965 = vmatmul.mubr.f32.gmra.mrb[0].mxu0 %v895
  %v966 = vpop.f32.mrb[0].mxu0
  %v967 = vadd.f32 0.0, %v966
  %v968 = vpop.f32.mrb[0].mxu0
  %969 = vdwg.mxu0
  %v971 = vsel %vm35, %v588, 0
  %v974 = vsel %vm592, %v34, 0
  %976 = vmatprep.subr.mxu0 0.0
  %977 = vmatpush1.msra.mxu0 %v974
  %978 = vmatprep.subr.mxu0 0.0
  %979 = vmatpush1.msra.mxu0 0.0
  %980 = vmatprep.subr.mxu0 0.0
  %981 = vmatpush1.msra.mxu0 0.0
  %982 = vmatprep.subr.mxu0 0.0
  %983 = vmatpush1.msra.mxu0 0.0
  %984 = vmatprep.subr.mxu0 0.0
  %985 = vmatpush1.msra.mxu0 0.0
  %986 = vmatprep.subr.mxu0 0.0
  %987 = vmatpush1.msra.mxu0 0.0
  %988 = vmatprep.subr.mxu0 0.0
  %989 = vmatpush1.msra.mxu0 0.0
  %990 = vmatprep.subr.mxu0 0.0
  %991 = vmatpush1.msra.mxu0 0.0
  %992 = vmatprep.subr.mxu0 0.0
  %993 = vmatpush1.msra.mxu0 0.0
  %994 = vmatprep.subr.mxu0 0.0
  %995 = vmatpush1.msra.mxu0 0.0
  %996 = vmatprep.subr.mxu0 0.0
  %997 = vmatpush1.msra.mxu0 0.0
  %998 = vmatprep.subr.mxu0 0.0
  %999 = vmatpush1.msra.mxu0 0.0
  %1000 = vmatprep.subr.mxu0 0.0
  %1001 = vmatpush1.msra.mxu0 0.0
  %1002 = vmatprep.subr.mxu0 0.0
  %1003 = vmatpush1.msra.mxu0 0.0
  %1004 = vmatprep.subr.mxu0 0.0
  %1005 = vmatpush1.msra.mxu0 0.0
  %1006 = vmatprep.subr.mxu0 0.0
  %1007 = vmatpush1.msra.mxu0 0.0
  %1008 = vmatprep.subr.mxu0 0.0
  %1009 = vmatpush1.msra.mxu0 0.0
  %1010 = vmatprep.subr.mxu0 0.0
  %1011 = vmatpush1.msra.mxu0 0.0
  %1012 = vmatprep.subr.mxu0 0.0
  %1013 = vmatpush1.msra.mxu0 0.0
  %1014 = vmatprep.subr.mxu0 0.0
  %1015 = vmatpush1.msra.mxu0 0.0
  %1016 = vmatprep.subr.mxu0 0.0
  %1017 = vmatpush1.msra.mxu0 0.0
  %1018 = vmatprep.subr.mxu0 0.0
  %1019 = vmatpush1.msra.mxu0 0.0
  %1020 = vmatprep.subr.mxu0 0.0
  %1021 = vmatpush1.msra.mxu0 0.0
  %1022 = vmatprep.subr.mxu0 0.0
  %1023 = vmatpush1.msra.mxu0 0.0
  %1024 = vmatprep.subr.mxu0 0.0
  %1025 = vmatpush1.msra.mxu0 0.0
  %1026 = vmatprep.subr.mxu0 0.0
  %1027 = vmatpush1.msra.mxu0 0.0
  %1028 = vmatprep.subr.mxu0 0.0
  %1029 = vmatpush1.msra.mxu0 0.0
  %1030 = vmatprep.subr.mxu0 0.0
  %1031 = vmatpush1.msra.mxu0 0.0
  %1032 = vmatprep.subr.mxu0 0.0
  %1033 = vmatpush1.msra.mxu0 0.0
  %1034 = vmatprep.subr.mxu0 0.0
  %1035 = vmatpush1.msra.mxu0 0.0
  %1036 = vmatprep.subr.mxu0 0.0
  %1037 = vmatpush1.msra.mxu0 0.0
  %1038 = vmatprep.subr.mxu0 0.0
  %1039 = vmatpush1.msra.mxu0 0.0
  %1040 = vmatprep.mubr.f32.mxu0 0.0
  %1041 = vmatmul.mubr.f32.gmra.mrb[0].mxu0 %v971
  %v1042 = vpop.f32.mrb[0].mxu0
  %v1043 = vadd.f32 0.0, %v1042
  %v1044 = vpop.f32.mrb[0].mxu0
  %1045 = vdwg.mxu0
  %1046 = vst.msk [vmem:[%s4] sm:$0x1f] %vm498, %v663
  %1047 = vst.msk [vmem:[%s4 + $0x8] sm:$0x1f] %vm498, %v739
  %1048 = vst.msk [vmem:[%s4 + $0x10] sm:$0x1f] %vm498, %v815
  %1049 = vst.msk [vmem:[%s4 + $0x18] sm:$0x1f] %vm498, %v891
  %1050 = vst.msk [vmem:[%s4 + $0x20] sm:$0x1f] %vm498, %v967
  %1051 = vst.msk [vmem:[%s4 + $0x28] sm:$0x1f] %vm498, %v1043
  // Predicated region
  $region18: #{tpu_custom_call.1} parent=0 // pred_check
    _
  $region19: #{tpu_custom_call.1} parent=0 // pred_check_branch
    %1053 = sbr.rel (0) target = $region21
  $region20: #{tpu_custom_call.1} parent=0 // pred_region
    _
  $region21: #{tpu_custom_call.1} parent=0 // pred_fallthru
    _
  // Predicated region
  $region22: #{tpu_custom_call.1} parent=0 // pred_check
    _
  $region23: #{tpu_custom_call.1} parent=0 // pred_check_branch
    %1055 = sbr.rel (0) target = $region25
  $region24: #{tpu_custom_call.1} parent=0 // pred_region
    _
  $region25: #{tpu_custom_call.1} parent=0 // pred_fallthru
    _

</llo_original>
